<compile_context>
chip_gen: v7x
topology: tpu7x:2x2x1
jax: 0.10.0
libtpu: 0.0.40
codegen_flags: <defaults>
</compile_context>

<pallas_src>
import jax
import jax.numpy as jnp
from jax.experimental import pallas as pl
from jax.experimental.pallas import tpu as pltpu


def _round_up(v: int, m: int) -> int:
    return (v + m - 1) // m * m


def _vmem_limit_bytes() -> int:
    """Generation-aware VMEM limit: physical capacity minus ~15% headroom."""
    cap = 128 * 1024 * 1024  # v5e / v6e physical; v7x reports 64 MiB via get_tpu_info.
    try:
        info = pltpu.get_tpu_info()
        cap = int(getattr(info, "vmem_capacity_bytes", cap))
    except Exception:
        pass
    return int(cap * 0.85)


def structure_predictor_kernel(x_ref, w1_ref, b1_ref, w2_ref, b2_ref, out_ref, acc_ref):
    """One (batch-tile, hidden-chunk) grid step of relu(x @ W1 + b1) @ W2 + b2."""
    k = pl.program_id(1)

    @pl.when(k == 0)
    def _():
        acc_ref[...] = jnp.zeros_like(acc_ref)

    # fc1 chunk (MXU, f32 accumulation) + bias + ReLU (VPU, f32).
    h = jnp.dot(x_ref[...], w1_ref[...], preferred_element_type=jnp.float32) + b1_ref[...]
    h = jnp.maximum(h, 0.0)
    # dropout(p=0.1) is identity in eval/inference mode.
    # TODO(synk): training-mode dropout would use pltpu.prng_seed + pltpu.stateful_bernoulli.

    # fc2 chunk accumulate (cast h to the weight dtype so bf16 weights hit the bf16 MXU
    # path; this drops fc1's f32 accumulation precision and is the dominant bf16 error).
    acc_ref[...] += jnp.dot(h.astype(w2_ref.dtype), w2_ref[...],
                            preferred_element_type=jnp.float32)

    @pl.when(k == pl.num_programs(1) - 1)
    def _():
        out_ref[...] = (acc_ref[...] + b2_ref[...]).astype(out_ref.dtype)


def prepare_params(w1, b1, w2, b2, *, matmul_dtype=jnp.bfloat16):
    """Pad weights once (lane-dense, multiples of 128) in the matmul dtype; biases stay f32.

    Zero padding keeps the math exact: padded hidden columns get zero weight/bias, so
    relu(0) = 0 contributes nothing to fc2; padded output columns are sliced off later.
    """
    H = w1.shape[0]
    C = w2.shape[1]
    Hp = _round_up(H, 128)
    Cp = _round_up(C, 128)
    w1_p = jnp.zeros((Hp, Hp), matmul_dtype).at[:H, :H].set(w1.astype(matmul_dtype))
    b1_p = jnp.zeros((1, Hp), jnp.float32).at[0, :H].set(b1.astype(jnp.float32))
    w2_p = jnp.zeros((Hp, Cp), matmul_dtype).at[:H, :C].set(w2.astype(matmul_dtype))
    b2_p = jnp.zeros((1, Cp), jnp.float32).at[0, :C].set(b2.astype(jnp.float32))
    return w1_p, b1_p, w2_p, b2_p


def _pick_hidden_chunk(Hp, Cp, itemsize, budget_bytes):
    """Largest multiple-of-128 divisor of Hp whose (w1 col block + w2 row block) fits budget."""
    for tkh in range(Hp, 127, -128):
        if Hp % tkh == 0 and (Hp * tkh + tkh * Cp) * itemsize <= budget_bytes:
            return tkh
    return 128


def structure_predictor(x, params, *, num_classes, block_b=256, hidden_chunk=None):
    """x: (B, H) -> (B, num_classes) f32.  `params` comes from prepare_params()."""
    w1_p, b1_p, w2_p, b2_p = params
    B, H = x.shape
    Hp = w1_p.shape[0]
    Cp = w2_p.shape[1]
    mm_dtype = w1_p.dtype
    itemsize = jnp.dtype(mm_dtype).itemsize

    vmem_limit = _vmem_limit_bytes()

    # Batch tile: multiple of the packed sublane tile (16 rows for bf16, 8 for f32).
    sub = 16 if itemsize < 4 else 8
    bm = min(_round_up(block_b, sub), _round_up(B, sub))
    B_pad = _round_up(B, bm)

    # Hidden-chunk size: keep per-step weight tiles within ~half the VMEM budget.
    if hidden_chunk is None:
        tkh = _pick_hidden_chunk(Hp, Cp, itemsize, vmem_limit // 2)
    else:
        tkh = hidden_chunk
    assert Hp % tkh == 0 and tkh % 128 == 0
    nk = Hp // tkh

    # Skip the x padding copy when the input already conforms; otherwise pad directly in
    # the matmul dtype (padded batch rows are sliced off after the call).
    if B_pad == B and Hp == H and x.dtype == mm_dtype:
        x_p = x
    else:
        x_p = jnp.zeros((B_pad, Hp), mm_dtype).at[:B, :H].set(x.astype(mm_dtype))

    # Single-buffer operands whose block never changes across the grid (constant
    # index_map) instead of the default double-buffering.
    def spec(shape, index_map, *, resident=False):
        if resident:
            return pl.BlockSpec(shape, index_map, pipeline_mode=pl.Buffered(1))
        return pl.BlockSpec(shape, index_map)

    weights_resident = (nk == 1)

    grid = (B_pad // bm, nk)
    flops = 2 * B_pad * Hp * (Hp + Cp)
    bytes_accessed = int(x_p.size * itemsize + w1_p.size * itemsize + w2_p.size * itemsize
                         + (b1_p.size + b2_p.size + B_pad * Cp) * 4)

    out_p = pl.pallas_call(
        structure_predictor_kernel,
        out_shape=jax.ShapeDtypeStruct((B_pad, Cp), jnp.float32),
        grid=grid,
        in_specs=[
            spec((bm, Hp), lambda i, k: (i, 0)),                              # x batch tile
            spec((Hp, tkh), lambda i, k: (0, k), resident=weights_resident),  # w1 col chunk
            spec((1, tkh), lambda i, k: (0, k), resident=weights_resident),   # b1 chunk
            spec((tkh, Cp), lambda i, k: (k, 0), resident=weights_resident),  # w2 row chunk
            spec((1, Cp), lambda i, k: (0, 0), resident=True),                # b2 (constant)
        ],
        out_specs=pl.BlockSpec((bm, Cp), lambda i, k: (i, 0)),
        scratch_shapes=[pltpu.VMEM((bm, Cp), jnp.float32)],
        compiler_params=pltpu.CompilerParams(
            dimension_semantics=("parallel", "arbitrary"),
            vmem_limit_bytes=vmem_limit,
        ),
        cost_estimate=pl.CostEstimate(flops=flops, transcendentals=0,
                                      bytes_accessed=bytes_accessed),
    )(x_p, w1_p, b1_p, w2_p, b2_p)

    return out_p[:B, :num_classes]


def init_params(key, hidden_size, num_classes):
    """Deterministic parameter init (PyTorch-style uniform bounds), weights stored (in, out)."""
    k1, k2, k3, k4 = jax.random.split(key, 4)
    bound = 1.0 / jnp.sqrt(hidden_size)
    w1 = jax.random.uniform(k1, (hidden_size, hidden_size), jnp.float32, -bound, bound)
    b1 = jax.random.uniform(k2, (hidden_size,), jnp.float32, -bound, bound)
    w2 = jax.random.uniform(k3, (hidden_size, num_classes), jnp.float32, -bound, bound)
    b2 = jax.random.uniform(k4, (num_classes,), jnp.float32, -bound, bound)
    return w1, b1, w2, b2


if __name__ == "__main__":
    batch = 8
    hidden_size = 32
    num_classes = 16

    key = jax.random.PRNGKey(0)
    kx, kp = jax.random.split(key)
    x = jax.random.normal(kx, (batch, hidden_size), dtype=jnp.float32)
    w1, b1, w2, b2 = init_params(kp, hidden_size, num_classes)
    ref = jnp.maximum(x @ w1 + b1, 0.0) @ w2 + b2  # dropout is identity in eval mode

    # f32 matmul path: exact check against the pure-JAX reference.
    params_f32 = prepare_params(w1, b1, w2, b2, matmul_dtype=jnp.float32)
    out_f32 = jax.block_until_ready(
        structure_predictor(x, params_f32, num_classes=num_classes))
    assert out_f32.shape == (batch, num_classes)
    assert jnp.allclose(out_f32, ref, atol=1e-5, rtol=1e-5)

    # Default bf16 matmul path (MXU fast path on v5e/v6e/v7x): looser tolerance.
    params_bf16 = prepare_params(w1, b1, w2, b2)
    out_bf16 = jax.block_until_ready(
        structure_predictor(x, params_bf16, num_classes=num_classes))
    assert out_bf16.shape == (batch, num_classes)
    assert bool(jnp.all(jnp.isfinite(out_bf16)))
    assert jnp.allclose(out_bf16, ref, atol=1e-1, rtol=1e-1)

    # Multi-tile / multi-chunk path: 2 batch tiles x 2 hidden chunks exercises the
    # accumulator init/finalize, non-resident weight pipelining, and padded-batch slicing.
    batch2, hidden2, classes2 = 48, 256, 16
    kx2, kp2 = jax.random.split(jax.random.PRNGKey(0), 2)
    x2 = jax.random.normal(kx2, (batch2, hidden2), dtype=jnp.float32)
    w1b, b1b, w2b, b2b = init_params(kp2, hidden2, classes2)
    ref2 = jnp.maximum(x2 @ w1b + b1b, 0.0) @ w2b + b2b
    params2 = prepare_params(w1b, b1b, w2b, b2b, matmul_dtype=jnp.float32)
    out2 = jax.block_until_ready(
        structure_predictor(x2, params2, num_classes=classes2,
                            block_b=32, hidden_chunk=128))
    assert out2.shape == (batch2, classes2)
    assert jnp.allclose(out2, ref2, atol=1e-4, rtol=1e-4)

    print("KERNEL_OK")
</pallas_src>

<mosaic_0001>
module attributes {stable_mosaic.version = 11 : i64} {
  func.func @structure_predictor_kernel(%arg0: i32, %arg1: i32, %arg2: memref<8x128xf32, #tpu.memory_space<vmem>>, %arg3: memref<128x128xf32, #tpu.memory_space<vmem>>, %arg4: memref<1x128xf32, #tpu.memory_space<vmem>>, %arg5: memref<128x128xf32, #tpu.memory_space<vmem>>, %arg6: memref<1x128xf32, #tpu.memory_space<vmem>>, %arg7: memref<8x128xf32, #tpu.memory_space<vmem>>, %arg8: memref<8x128xf32, #tpu.memory_space<vmem>>) attributes {dimension_semantics = [#tpu.dimension_semantics<parallel>, #tpu.dimension_semantics<arbitrary>], iteration_bounds = array<i64: 1, 1>, scalar_prefetch = 0 : i64, scratch_operands = 1 : i64, tpu.core_type = #tpu.core_type<tc>, window_params = [{transform_indices = @transform_0, window_bounds = array<i64: 8, 128>}, {pipeline_mode = #tpu.pipeline_mode<synchronous>, transform_indices = @transform_1, window_bounds = array<i64: 128, 128>}, {pipeline_mode = #tpu.pipeline_mode<synchronous>, transform_indices = @transform_2, window_bounds = array<i64: 1, 128>}, {pipeline_mode = #tpu.pipeline_mode<synchronous>, transform_indices = @transform_3, window_bounds = array<i64: 128, 128>}, {pipeline_mode = #tpu.pipeline_mode<synchronous>, transform_indices = @transform_4, window_bounds = array<i64: 1, 128>}, {transform_indices = @transform_5, window_bounds = array<i64: 8, 128>}]} {
    %c0_i32 = arith.constant 0 : i32
    %0 = arith.cmpi eq, %arg1, %c0_i32 : i32
    %1 = arith.extui %0 : i1 to i32
    %c0_i32_0 = arith.constant 0 : i32
    %2 = arith.cmpi ne, %1, %c0_i32_0 : i32
    scf.if %2 {
      %cst_16 = arith.constant 0.000000e+00 : f32
      %19 = vector.broadcast %cst_16 : f32 to vector<8x128xf32>
      %c0_17 = arith.constant 0 : index
      %c0_18 = arith.constant 0 : index
      %20 = vector.load %arg8[%c0_17, %c0_18] : memref<8x128xf32, #tpu.memory_space<vmem>>, vector<8x128xf32>
      tpu.vector_store %arg8[%c0_17, %c0_18], %19 {strides = array<i32>} : memref<8x128xf32, #tpu.memory_space<vmem>>, vector<8x128xf32>,
    } else {
    }
    %c0 = arith.constant 0 : index
    %c0_1 = arith.constant 0 : index
    %3 = vector.load %arg2[%c0, %c0_1] : memref<8x128xf32, #tpu.memory_space<vmem>>, vector<8x128xf32>
    %c0_2 = arith.constant 0 : index
    %c0_3 = arith.constant 0 : index
    %4 = vector.load %arg3[%c0_2, %c0_3] : memref<128x128xf32, #tpu.memory_space<vmem>>, vector<128x128xf32>
    %cst = arith.constant dense<0.000000e+00> : vector<8x128xf32>
    %5 = tpu.matmul %3, %4, %cst {dimension_numbers = #tpu.dot_dimension_numbers<[1], [0], [0], [1], [0, 0, 1, 1], [], []>} : vector<8x128xf32>, vector<128x128xf32>, vector<8x128xf32> -> vector<8x128xf32>
    %c0_4 = arith.constant 0 : index
    %c0_5 = arith.constant 0 : index
    %6 = vector.load %arg4[%c0_4, %c0_5] : memref<1x128xf32, #tpu.memory_space<vmem>>, vector<1x128xf32>
    %7 = vector.broadcast %6 : vector<1x128xf32> to vector<8x128xf32>
    %8 = arith.addf %5, %7 : vector<8x128xf32>
    %cst_6 = arith.constant 0.000000e+00 : f32
    %9 = vector.broadcast %cst_6 : f32 to vector<8x128xf32>
    %10 = arith.maximumf %8, %9 : vector<8x128xf32>
    %c0_7 = arith.constant 0 : index
    %c0_8 = arith.constant 0 : index
    %11 = vector.load %arg8[%c0_7, %c0_8] : memref<8x128xf32, #tpu.memory_space<vmem>>, vector<8x128xf32>
    %c0_9 = arith.constant 0 : index
    %c0_10 = arith.constant 0 : index
    %12 = vector.load %arg5[%c0_9, %c0_10] : memref<128x128xf32, #tpu.memory_space<vmem>>, vector<128x128xf32>
    %cst_11 = arith.constant dense<0.000000e+00> : vector<8x128xf32>
    %13 = tpu.matmul %10, %12, %cst_11 {dimension_numbers = #tpu.dot_dimension_numbers<[1], [0], [0], [1], [0, 0, 1, 1], [], []>} : vector<8x128xf32>, vector<128x128xf32>, vector<8x128xf32> -> vector<8x128xf32>
    %14 = arith.addf %11, %13 : vector<8x128xf32>
    %c0_12 = arith.constant 0 : index
    %c0_13 = arith.constant 0 : index
    %15 = vector.load %arg8[%c0_12, %c0_13] : memref<8x128xf32, #tpu.memory_space<vmem>>, vector<8x128xf32>
    tpu.vector_store %arg8[%c0_12, %c0_13], %14 {strides = array<i32>} : memref<8x128xf32, #tpu.memory_space<vmem>>, vector<8x128xf32>,
    %c0_i32_14 = arith.constant 0 : i32
    %16 = arith.cmpi eq, %arg1, %c0_i32_14 : i32
    %17 = arith.extui %16 : i1 to i32
    %c0_i32_15 = arith.constant 0 : i32
    %18 = arith.cmpi ne, %17, %c0_i32_15 : i32
    scf.if %18 {
      %c0_16 = arith.constant 0 : index
      %c0_17 = arith.constant 0 : index
      %19 = vector.load %arg8[%c0_16, %c0_17] : memref<8x128xf32, #tpu.memory_space<vmem>>, vector<8x128xf32>
      %c0_18 = arith.constant 0 : index
      %c0_19 = arith.constant 0 : index
      %20 = vector.load %arg6[%c0_18, %c0_19] : memref<1x128xf32, #tpu.memory_space<vmem>>, vector<1x128xf32>
      %21 = vector.broadcast %20 : vector<1x128xf32> to vector<8x128xf32>
      %22 = arith.addf %19, %21 : vector<8x128xf32>
      %c0_20 = arith.constant 0 : index
      %c0_21 = arith.constant 0 : index
      %23 = vector.load %arg7[%c0_20, %c0_21] : memref<8x128xf32, #tpu.memory_space<vmem>>, vector<8x128xf32>
      tpu.vector_store %arg7[%c0_20, %c0_21], %22 {strides = array<i32>} : memref<8x128xf32, #tpu.memory_space<vmem>>, vector<8x128xf32>,
    } else {
    }
    return
  }
  func.func @transform_0(%arg0: i32, %arg1: i32) -> (i32, i32) {
    %c0_i32 = arith.constant 0 : i32
    %c0_i32_0 = arith.constant 0 : i32
    return %arg0, %c0_i32 : i32, i32
  }
  func.func @transform_1(%arg0: i32, %arg1: i32) -> (i32, i32) {
    %c0_i32 = arith.constant 0 : i32
    %c0_i32_0 = arith.constant 0 : i32
    return %c0_i32, %arg1 : i32, i32
  }
  func.func @transform_2(%arg0: i32, %arg1: i32) -> (i32, i32) {
    %c0_i32 = arith.constant 0 : i32
    %c0_i32_0 = arith.constant 0 : i32
    return %c0_i32, %arg1 : i32, i32
  }
  func.func @transform_3(%arg0: i32, %arg1: i32) -> (i32, i32) {
    %c0_i32 = arith.constant 0 : i32
    %c0_i32_0 = arith.constant 0 : i32
    return %arg1, %c0_i32 : i32, i32
  }
  func.func @transform_4(%arg0: i32, %arg1: i32) -> (i32, i32) {
    %c0_i32 = arith.constant 0 : i32
    %c0_i32_0 = arith.constant 0 : i32
    %c0_i32_1 = arith.constant 0 : i32
    return %c0_i32, %c0_i32_0 : i32, i32
  }
  func.func @transform_5(%arg0: i32, %arg1: i32) -> (i32, i32) {
    %c0_i32 = arith.constant 0 : i32
    %c0_i32_0 = arith.constant 0 : i32
    return %arg0, %c0_i32 : i32, i32
  }
}

</mosaic_0001>

<llo_original>
// kernel: tpu_custom_call.1
$region0: #{tpu_custom_call.1}
  #allocation0 [shape = 'u32[]', space=smem, size = 0x4, offset = 0x4, fixed_abs, tag = 'smem constant byte address 0x4 - core index']
  #allocation1 [shape = 'u32[144,128]{1,0:T(1,128)}', space=vmem, size = 0x12000, scoped, tag = 'internal scratch']
  #allocation2 [shape = 'f32[8,128]{1,0:T(8,128)}', space=vmem, size = 0x1000, scoped, tag = 'scratch operand']
  %s0 = inlined_call_operand.hbm [shape: f32[8,128], index: 0, kind: input, shape index: {}]
  %s1 = inlined_call_operand.hbm [shape: f32[128,128], index: 1, kind: input, shape index: {}]
  %s2 = inlined_call_operand.hbm [shape: f32[1,128], index: 2, kind: input, shape index: {}]
  %s3 = inlined_call_operand.hbm [shape: f32[128,128], index: 3, kind: input, shape index: {}]
  %s4 = inlined_call_operand.hbm [shape: f32[1,128], index: 4, kind: input, shape index: {}]
  %s5 = inlined_call_operand.hbm [shape: f32[8,128], index: 5, kind: output, shape index: {}]
  %s6 = sld [smem:[#allocation0]]
  $region58: #{tpu_custom_call.1} parent=0
    _
  %s8 = ssub.s32 1, %s6
  %s9 = scalar_select 0, %s8, %s6
  $region1: #{tpu_custom_call.1} parent=0
    #allocation3 [shape = 'u8[4096]{0}', space=vmem, size = 0x1000, scoped, tag = 'input window, operand 0, single buffered']
    #allocation4 [shape = 's32[1]{0}', space=sflag, size = 0x4, scoped, tag = 'scoped memory for tpu_custom_call.1']
    #allocation5 [shape = 's32[1]{0}', space=sflag, size = 0x4, scoped, tag = 'scoped memory for tpu_custom_call.1']
    #allocation6 [shape = 'u8[65536]{0}', space=vmem, size = 0x10000, scoped, tag = 'input window, operand 1, single buffered']
    #allocation7 [shape = 's32[1]{0}', space=sflag, size = 0x4, scoped, tag = 'scoped memory for tpu_custom_call.1']
    #allocation8 [shape = 'u8[512]{0}', space=vmem, size = 0x400, scoped, tag = 'input window, operand 2, single buffered']
    #allocation9 [shape = 'u8[65536]{0}', space=vmem, size = 0x10000, scoped, tag = 'input window, operand 3, single buffered']
    #allocation10 [shape = 's32[1]{0}', space=sflag, size = 0x4, scoped, tag = 'scoped memory for tpu_custom_call.1']
    #allocation11 [shape = 'u8[512]{0}', space=vmem, size = 0x400, scoped, tag = 'input window, operand 4, single buffered']
    #allocation12 [shape = 'u8[4096]{0}', space=vmem, size = 0x1000, scoped, tag = 'output window, operand 0, single buffered']
    %10 = vsyncpa [#allocation4], 0
    %11 = vsyncpa [#allocation7], 0
    %12 = vsyncpa [#allocation10], 0
    %13 = vsyncpa [#allocation5], 0
    // Predicated region
    $region2: #{tpu_custom_call.1} parent=1 // pred_check
      _
    $region3: #{tpu_custom_call.1} parent=1 // pred_check_branch
      %15 = sbr.rel (0) target = $region5
    $region4: #{tpu_custom_call.1} parent=1 // pred_region
      %s17 = ssub.s32 128, 128
      %18 = vsyncadd [#allocation4], %s17
      %s20 = sshll.u32 [#allocation3], 4
      %s21 = int_to_ptr.vmem [resolvable:$true] %s20
      %23 = dma.hbm_to_vmem [thread:$0]  %s0, 128, %s21, [#allocation4]
    $region5: #{tpu_custom_call.1} parent=1 // pred_fallthru
      _
    // Predicated region
    $region6: #{tpu_custom_call.1} parent=1 // pred_check
      _
    $region7: #{tpu_custom_call.1} parent=1 // pred_check_branch
      %25 = sbr.rel (0) target = $region9
    $region8: #{tpu_custom_call.1} parent=1 // pred_region
      %s27 = ssub.s32 2048, 2048
      %28 = vsyncadd [#allocation7], %s27
      %s29 = sshll.u32 [#allocation6], 4
      %s30 = int_to_ptr.vmem [resolvable:$true] %s29
      %35 = dma.hbm_to_vmem [thread:$0]  %s1, 2048, %s30, [#allocation7], 128, 128, 8
    $region9: #{tpu_custom_call.1} parent=1 // pred_fallthru
      _
    // Predicated region
    $region10: #{tpu_custom_call.1} parent=1 // pred_check
      _
    $region11: #{tpu_custom_call.1} parent=1 // pred_check_branch
      %37 = sbr.rel (0) target = $region13
    $region12: #{tpu_custom_call.1} parent=1 // pred_region
      %s39 = ssub.s32 16, 16
      %40 = vsyncadd [#allocation7], %s39
      %s42 = sshll.u32 [#allocation8], 4
      %s43 = int_to_ptr.vmem [resolvable:$true] %s42
      %45 = dma.hbm_to_vmem [thread:$0]  %s2, 16, %s43, [#allocation7]
    $region13: #{tpu_custom_call.1} parent=1 // pred_fallthru
      _
    // Predicated region
    $region14: #{tpu_custom_call.1} parent=1 // pred_check
      _
    $region15: #{tpu_custom_call.1} parent=1 // pred_check_branch
      %47 = sbr.rel (0) target = $region17
    $region16: #{tpu_custom_call.1} parent=1 // pred_region
      %s49 = ssub.s32 2048, 2048
      %50 = vsyncadd [#allocation10], %s49
      %s51 = sshll.u32 [#allocation9], 4
      %s52 = int_to_ptr.vmem [resolvable:$true] %s51
      %57 = dma.hbm_to_vmem [thread:$0]  %s3, 2048, %s52, [#allocation10], 128, 128, 8
    $region17: #{tpu_custom_call.1} parent=1 // pred_fallthru
      _
    // Predicated region
    $region18: #{tpu_custom_call.1} parent=1 // pred_check
      _
    $region19: #{tpu_custom_call.1} parent=1 // pred_check_branch
      %59 = sbr.rel (0) target = $region21
    $region20: #{tpu_custom_call.1} parent=1 // pred_region
      %s61 = ssub.s32 16, 16
      %62 = vsyncadd [#allocation10], %s61
      %s64 = sshll.u32 [#allocation11], 4
      %s65 = int_to_ptr.vmem [resolvable:$true] %s64
      %67 = dma.hbm_to_vmem [thread:$0]  %s4, 16, %s65, [#allocation10]
    $region21: #{tpu_custom_call.1} parent=1 // pred_fallthru
      _
    // Predicated region
    $region22: #{tpu_custom_call.1} parent=1 // pred_check
      _
    $region23: #{tpu_custom_call.1} parent=1 // pred_check_branch
      %69 = sbr.rel (0) target = $region25
    $region24: #{tpu_custom_call.1} parent=1 // pred_region
      %70 = dma.done [#allocation4], 128
    $region25: #{tpu_custom_call.1} parent=1 // pred_fallthru
      _
    // Predicated region
    $region26: #{tpu_custom_call.1} parent=1 // pred_check
      _
    $region27: #{tpu_custom_call.1} parent=1 // pred_check_branch
      %72 = sbr.rel (0) target = $region29
    $region28: #{tpu_custom_call.1} parent=1 // pred_region
      %73 = dma.done [#allocation7], 2048
    $region29: #{tpu_custom_call.1} parent=1 // pred_fallthru
      _
    // Predicated region
    $region30: #{tpu_custom_call.1} parent=1 // pred_check
      _
    $region31: #{tpu_custom_call.1} parent=1 // pred_check_branch
      %75 = sbr.rel (0) target = $region33
    $region32: #{tpu_custom_call.1} parent=1 // pred_region
      %76 = dma.done [#allocation7], 16
    $region33: #{tpu_custom_call.1} parent=1 // pred_fallthru
      _
    // Predicated region
    $region34: #{tpu_custom_call.1} parent=1 // pred_check
      _
    $region35: #{tpu_custom_call.1} parent=1 // pred_check_branch
      %78 = sbr.rel (0) target = $region37
    $region36: #{tpu_custom_call.1} parent=1 // pred_region
      %79 = dma.done [#allocation10], 2048
    $region37: #{tpu_custom_call.1} parent=1 // pred_fallthru
      _
    // Predicated region
    $region38: #{tpu_custom_call.1} parent=1 // pred_check
      _
    $region39: #{tpu_custom_call.1} parent=1 // pred_check_branch
      %81 = sbr.rel (0) target = $region41
    $region40: #{tpu_custom_call.1} parent=1 // pred_region
      %82 = dma.done [#allocation10], 16
    $region41: #{tpu_custom_call.1} parent=1 // pred_fallthru
      _
    %p83 = scmp.eq.s32.totalorder 0, 0
    // Predicated region
    $region42: #{tpu_custom_call.1} parent=1 // pred_check
      %p84 = pneg %p83
    $region43: #{tpu_custom_call.1} parent=1 // pred_check_branch
      %86 = sbr.rel (%p84) target = $region45
    $region44: #{tpu_custom_call.1} parent=1 // pred_region
      %87 = vst [vmem:[#allocation2] sm:$0xff] 0.0
    $region45: #{tpu_custom_call.1} parent=1 // pred_fallthru
      _
    %v88 = vld [vmem:[#allocation3] sm:$0xff]
    %v89 = vld [vmem:[#allocation6] sm:$0xff]
    %v90 = vld [vmem:[#allocation6 + $0x8] sm:$0xff]
    %v91 = vld [vmem:[#allocation6 + $0x10] sm:$0xff]
    %v92 = vld [vmem:[#allocation6 + $0x18] sm:$0xff]
    %v93 = vld [vmem:[#allocation6 + $0x20] sm:$0xff]
    %v94 = vld [vmem:[#allocation6 + $0x28] sm:$0xff]
    %v95 = vld [vmem:[#allocation6 + $0x30] sm:$0xff]
    %v96 = vld [vmem:[#allocation6 + $0x38] sm:$0xff]
    %v97 = vld [vmem:[#allocation6 + $0x40] sm:$0xff]
    %v98 = vld [vmem:[#allocation6 + $0x48] sm:$0xff]
    %v99 = vld [vmem:[#allocation6 + $0x50] sm:$0xff]
    %v100 = vld [vmem:[#allocation6 + $0x58] sm:$0xff]
    %v101 = vld [vmem:[#allocation6 + $0x60] sm:$0xff]
    %v102 = vld [vmem:[#allocation6 + $0x68] sm:$0xff]
    %v103 = vld [vmem:[#allocation6 + $0x70] sm:$0xff]
    %v104 = vld [vmem:[#allocation6 + $0x78] sm:$0xff]
    %v105 = vld [vmem:[#allocation8] sm:$0x1]
    %v107 = vlaneseq
    %v108 = vshrl.u32 %v107, 7
    %v109 = vsub.s32 0, %v108
    %v110 = vrot.slane %v105, %v109
    %112 = vmatprep.subr.mxu0 0.0
    %113 = vmatpush1.msra.mxu0 %v89
    %114 = vmatprep.subr.mxu0 0.0
    %115 = vmatpush1.msra.mxu0 %v90
    %116 = vmatprep.subr.mxu0 0.0
    %117 = vmatpush1.msra.mxu0 %v91
    %118 = vmatprep.subr.mxu0 0.0
    %119 = vmatpush1.msra.mxu0 %v92
    %120 = vmatprep.subr.mxu0 0.0
    %121 = vmatpush1.msra.mxu0 %v93
    %122 = vmatprep.subr.mxu0 0.0
    %123 = vmatpush1.msra.mxu0 %v94
    %124 = vmatprep.subr.mxu0 0.0
    %125 = vmatpush1.msra.mxu0 %v95
    %126 = vmatprep.subr.mxu0 0.0
    %127 = vmatpush1.msra.mxu0 %v96
    %128 = vmatprep.subr.mxu0 0.0
    %129 = vmatpush1.msra.mxu0 %v97
    %130 = vmatprep.subr.mxu0 0.0
    %131 = vmatpush1.msra.mxu0 %v98
    %132 = vmatprep.subr.mxu0 0.0
    %133 = vmatpush1.msra.mxu0 %v99
    %134 = vmatprep.subr.mxu0 0.0
    %135 = vmatpush1.msra.mxu0 %v100
    %136 = vmatprep.subr.mxu0 0.0
    %137 = vmatpush1.msra.mxu0 %v101
    %138 = vmatprep.subr.mxu0 0.0
    %139 = vmatpush1.msra.mxu0 %v102
    %140 = vmatprep.subr.mxu0 0.0
    %141 = vmatpush1.msra.mxu0 %v103
    %142 = vmatprep.subr.mxu0 0.0
    %143 = vmatpush1.msra.mxu0 %v104
    %144 = vmatprep.subr.mxu0 0.0
    %145 = vmatpush1.msra.mxu0 0.0
    %146 = vmatprep.subr.mxu0 0.0
    %147 = vmatpush1.msra.mxu0 0.0
    %148 = vmatprep.subr.mxu0 0.0
    %149 = vmatpush1.msra.mxu0 0.0
    %150 = vmatprep.subr.mxu0 0.0
    %151 = vmatpush1.msra.mxu0 0.0
    %152 = vmatprep.subr.mxu0 0.0
    %153 = vmatpush1.msra.mxu0 0.0
    %154 = vmatprep.subr.mxu0 0.0
    %155 = vmatpush1.msra.mxu0 0.0
    %156 = vmatprep.subr.mxu0 0.0
    %157 = vmatpush1.msra.mxu0 0.0
    %158 = vmatprep.subr.mxu0 0.0
    %159 = vmatpush1.msra.mxu0 0.0
    %160 = vmatprep.subr.mxu0 0.0
    %161 = vmatpush1.msra.mxu0 0.0
    %162 = vmatprep.subr.mxu0 0.0
    %163 = vmatpush1.msra.mxu0 0.0
    %164 = vmatprep.subr.mxu0 0.0
    %165 = vmatpush1.msra.mxu0 0.0
    %166 = vmatprep.subr.mxu0 0.0
    %167 = vmatpush1.msra.mxu0 0.0
    %168 = vmatprep.subr.mxu0 0.0
    %169 = vmatpush1.msra.mxu0 0.0
    %170 = vmatprep.subr.mxu0 0.0
    %171 = vmatpush1.msra.mxu0 0.0
    %172 = vmatprep.subr.mxu0 0.0
    %173 = vmatpush1.msra.mxu0 0.0
    %174 = vmatprep.subr.mxu0 0.0
    %175 = vmatpush1.msra.mxu0 0.0
    %176 = vmatprep.mubr.f32.mxu0 0.0
    %177 = vmatmul.mubr.f32.gmra.mrb[0].mxu0 %v88
    %v178 = vpop.f32.mrb[0].mxu0
    %v179 = vadd.f32 %v110, %v178
    %v180 = vpop.f32.mrb[0].mxu0
    %181 = vdwg.mxu0
    %v182 = vmax.f32 %v179, 0.0
    %v183 = vld [vmem:[#allocation2] sm:$0xff]
    %v184 = vld [vmem:[#allocation9] sm:$0xff]
    %v185 = vld [vmem:[#allocation9 + $0x8] sm:$0xff]
    %v186 = vld [vmem:[#allocation9 + $0x10] sm:$0xff]
    %v187 = vld [vmem:[#allocation9 + $0x18] sm:$0xff]
    %v188 = vld [vmem:[#allocation9 + $0x20] sm:$0xff]
    %v189 = vld [vmem:[#allocation9 + $0x28] sm:$0xff]
    %v190 = vld [vmem:[#allocation9 + $0x30] sm:$0xff]
    %v191 = vld [vmem:[#allocation9 + $0x38] sm:$0xff]
    %v192 = vld [vmem:[#allocation9 + $0x40] sm:$0xff]
    %v193 = vld [vmem:[#allocation9 + $0x48] sm:$0xff]
    %v194 = vld [vmem:[#allocation9 + $0x50] sm:$0xff]
    %v195 = vld [vmem:[#allocation9 + $0x58] sm:$0xff]
    %v196 = vld [vmem:[#allocation9 + $0x60] sm:$0xff]
    %v197 = vld [vmem:[#allocation9 + $0x68] sm:$0xff]
    %v198 = vld [vmem:[#allocation9 + $0x70] sm:$0xff]
    %v199 = vld [vmem:[#allocation9 + $0x78] sm:$0xff]
    %200 = vmatprep.subr.mxu0 0.0
    %201 = vmatpush1.msra.mxu0 %v184
    %202 = vmatprep.subr.mxu0 0.0
    %203 = vmatpush1.msra.mxu0 %v185
    %204 = vmatprep.subr.mxu0 0.0
    %205 = vmatpush1.msra.mxu0 %v186
    %206 = vmatprep.subr.mxu0 0.0
    %207 = vmatpush1.msra.mxu0 %v187
    %208 = vmatprep.subr.mxu0 0.0
    %209 = vmatpush1.msra.mxu0 %v188
    %210 = vmatprep.subr.mxu0 0.0
    %211 = vmatpush1.msra.mxu0 %v189
    %212 = vmatprep.subr.mxu0 0.0
    %213 = vmatpush1.msra.mxu0 %v190
    %214 = vmatprep.subr.mxu0 0.0
    %215 = vmatpush1.msra.mxu0 %v191
    %216 = vmatprep.subr.mxu0 0.0
    %217 = vmatpush1.msra.mxu0 %v192
    %218 = vmatprep.subr.mxu0 0.0
    %219 = vmatpush1.msra.mxu0 %v193
    %220 = vmatprep.subr.mxu0 0.0
    %221 = vmatpush1.msra.mxu0 %v194
    %222 = vmatprep.subr.mxu0 0.0
    %223 = vmatpush1.msra.mxu0 %v195
    %224 = vmatprep.subr.mxu0 0.0
    %225 = vmatpush1.msra.mxu0 %v196
    %226 = vmatprep.subr.mxu0 0.0
    %227 = vmatpush1.msra.mxu0 %v197
    %228 = vmatprep.subr.mxu0 0.0
    %229 = vmatpush1.msra.mxu0 %v198
    %230 = vmatprep.subr.mxu0 0.0
    %231 = vmatpush1.msra.mxu0 %v199
    %232 = vmatprep.subr.mxu0 0.0
    %233 = vmatpush1.msra.mxu0 0.0
    %234 = vmatprep.subr.mxu0 0.0
    %235 = vmatpush1.msra.mxu0 0.0
    %236 = vmatprep.subr.mxu0 0.0
    %237 = vmatpush1.msra.mxu0 0.0
    %238 = vmatprep.subr.mxu0 0.0
    %239 = vmatpush1.msra.mxu0 0.0
    %240 = vmatprep.subr.mxu0 0.0
    %241 = vmatpush1.msra.mxu0 0.0
    %242 = vmatprep.subr.mxu0 0.0
    %243 = vmatpush1.msra.mxu0 0.0
    %244 = vmatprep.subr.mxu0 0.0
    %245 = vmatpush1.msra.mxu0 0.0
    %246 = vmatprep.subr.mxu0 0.0
    %247 = vmatpush1.msra.mxu0 0.0
    %248 = vmatprep.subr.mxu0 0.0
    %249 = vmatpush1.msra.mxu0 0.0
    %250 = vmatprep.subr.mxu0 0.0
    %251 = vmatpush1.msra.mxu0 0.0
    %252 = vmatprep.subr.mxu0 0.0
    %253 = vmatpush1.msra.mxu0 0.0
    %254 = vmatprep.subr.mxu0 0.0
    %255 = vmatpush1.msra.mxu0 0.0
    %256 = vmatprep.subr.mxu0 0.0
    %257 = vmatpush1.msra.mxu0 0.0
    %258 = vmatprep.subr.mxu0 0.0
    %259 = vmatpush1.msra.mxu0 0.0
    %260 = vmatprep.subr.mxu0 0.0
    %261 = vmatpush1.msra.mxu0 0.0
    %262 = vmatprep.subr.mxu0 0.0
    %263 = vmatpush1.msra.mxu0 0.0
    %264 = vmatprep.mubr.f32.mxu0 0.0
    %265 = vmatmul.mubr.f32.gmra.mrb[0].mxu0 %v182
    %v266 = vpop.f32.mrb[0].mxu0
    %v267 = vadd.f32 0.0, %v266
    %v268 = vpop.f32.mrb[0].mxu0
    %269 = vdwg.mxu0
    %v270 = vadd.f32 %v183, %v267
    %271 = vst [vmem:[#allocation2] sm:$0xff] %v270
    // Predicated region
    $region46: #{tpu_custom_call.1} parent=1 // pred_check
      %p272 = pneg %p83
    $region47: #{tpu_custom_call.1} parent=1 // pred_check_branch
      %274 = sbr.rel (%p272) target = $region49
    $region48: #{tpu_custom_call.1} parent=1 // pred_region
      %v275 = vld [vmem:[#allocation2] sm:$0xff]
      %v276 = vld [vmem:[#allocation11] sm:$0x1]
      %v278 = vlaneseq
      %v279 = vshrl.u32 %v278, 7
      %v280 = vsub.s32 0, %v279
      %v281 = vrot.slane %v276, %v280
      %v283 = vadd.f32 %v275, %v281
      %284 = vst [vmem:[#allocation12] sm:$0xff] %v283
    $region49: #{tpu_custom_call.1} parent=1 // pred_fallthru
      _
    // Predicated region
    $region50: #{tpu_custom_call.1} parent=1 // pred_check
      _
    $region51: #{tpu_custom_call.1} parent=1 // pred_check_branch
      %286 = sbr.rel (0) target = $region53
    $region52: #{tpu_custom_call.1} parent=1 // pred_region
      %s288 = ssub.s32 128, 128
      %289 = vsyncadd [#allocation5], %s288
      %s291 = sshll.u32 [#allocation12], 4
      %s292 = int_to_ptr.vmem [resolvable:$true] %s291
      %294 = dma.vmem_to_hbm [thread:$0]  %s292, 128, %s5, [#allocation5]
    $region53: #{tpu_custom_call.1} parent=1 // pred_fallthru
      _
    // Predicated region
    $region54: #{tpu_custom_call.1} parent=1 // pred_check
      _
    $region55: #{tpu_custom_call.1} parent=1 // pred_check_branch
      %296 = sbr.rel (0) target = $region57
    $region56: #{tpu_custom_call.1} parent=1 // pred_region
      %297 = dma.done [#allocation5], 128
    $region57: #{tpu_custom_call.1} parent=1 // pred_fallthru
      _
    %298 = vsyncpa [#allocation4], 1
    %299 = vsyncpa [#allocation7], 1
    %300 = vsyncpa [#allocation10], 1
    %301 = vsyncpa [#allocation5], 1

</llo_original>
